<compile_context>
chip_gen: v7x
topology: tpu7x:2x2x1
jax: 0.10.0
libtpu: 0.0.40
codegen_flags: <defaults>
</compile_context>

<pallas_src>
import functools

import jax
import jax.numpy as jnp
from jax.experimental import pallas as pl
from jax.experimental.pallas import tpu as pltpu

_LANE = 128


def _rmse_kernel(n_ref, sub_ref, y_ref, j_ref, k_ref, p_ref, out_ref, acc_ref,
                 *, n_subjects):
    """One grid step over a dense (R, 128) tile of observations.

    n_ref  : SMEM (1,)  int32   -- true number of observations (scalar prefetch)
    sub_ref: VMEM (R,128) int32 -- subject indices
    y/j/k  : VMEM (R,128) f32   -- observations
    p_ref  : SMEM (4, S)  f32   -- rows [relu(A), relu(U), -sigmoid(L)*0.2, sigmoid(G)]
    out_ref: SMEM (1, 1)  f32   -- scalar RMSE
    acc_ref: VMEM (8, 128) f32  -- dense per-lane partial sums of diff^2
    """
    i = pl.program_id(0)

    @pl.when(i == 0)
    def _():
        acc_ref[...] = jnp.zeros_like(acc_ref)

    sub = sub_ref[...]                      # (R, 128) int32
    yv = y_ref[...]
    jv = j_ref[...]
    kv = k_ref[...]
    rows = sub.shape[0]

    # In-kernel subject gather: unrolled compare + select against the tiny SMEM
    # parameter table (subjectcount entries).  Pure VALU work on dense vregs.
    Av = jnp.zeros_like(yv)
    Uv = jnp.zeros_like(yv)
    Lv = jnp.zeros_like(yv)
    Gv = jnp.zeros_like(yv)
    for s in range(n_subjects):
        m = sub == s
        Av = jnp.where(m, p_ref[0, s], Av)
        Uv = jnp.where(m, p_ref[1, s], Uv)
        Lv = jnp.where(m, p_ref[2, s], Lv)   # already negated & scaled
        Gv = jnp.where(m, p_ref[3, s], Gv)

    # One exp per element (EUP); everything else is VALU.
    mu = Av - Uv * jnp.exp(Lv * (jv + Gv * kv))
    diff = yv - mu

    # Mask lanes past the true length (lane padding and ragged last block).
    row_ids = jax.lax.broadcasted_iota(jnp.int32, (rows, _LANE), 0)
    lane_ids = jax.lax.broadcasted_iota(jnp.int32, (rows, _LANE), 1)
    gidx = (i * rows + row_ids) * _LANE + lane_ids
    sq = jnp.where(gidx < n_ref[0], diff * diff, 0.0)

    # Reduce this step's (R, 128) partials into the dense (8, 128) accumulator.
    if rows % 8 == 0:
        acc_ref[...] += jnp.sum(sq.reshape(rows // 8, 8, _LANE), axis=0)
    else:  # tiny-N case where the block equals the full (non-multiple-of-8) array
        acc_ref[0:1, :] += jnp.sum(sq, axis=0, keepdims=True)

    @pl.when(i == pl.num_programs(0) - 1)
    def _():
        total = jnp.sum(acc_ref[...])
        out_ref[0, 0] = jnp.sqrt(total / n_ref[0].astype(jnp.float32))


def first_model_loss(y, j, k, sub, A, U, Lambda, Gamma1, *, max_block_rows=2048):
    """Pallas implementation of FirstModel.forward -> scalar RMSE loss."""
    n = y.shape[0]
    n_subjects = A.shape[0]

    # modify_params on the tiny (subjectcount,) vectors; negation folded into Lambda.
    Ar = jax.nn.relu(A).astype(jnp.float32)
    Ur = jax.nn.relu(U).astype(jnp.float32)
    Ln = (-(jax.nn.sigmoid(Lambda) * 0.2)).astype(jnp.float32)
    Gr = jax.nn.sigmoid(Gamma1).astype(jnp.float32)
    params = jnp.stack([Ar, Ur, Ln, Gr], axis=0)          # (4, S) -> SMEM

    # Dense (rows, 128) layout.  Reshape is free when n % 128 == 0; otherwise a
    # small zero pad (masked in-kernel) brings the lane dim to a multiple of 128.
    n_lanes = pl.cdiv(n, _LANE) * _LANE

    def prep(x, dt):
        x = x.astype(dt).reshape(-1)
        if n_lanes != n:
            x = jnp.pad(x, (0, n_lanes - n))
        return x.reshape(n_lanes // _LANE, _LANE)

    sub2 = prep(sub, jnp.int32)
    y2 = prep(y, jnp.float32)
    j2 = prep(j, jnp.float32)
    k2 = prep(k, jnp.float32)

    n_rows = n_lanes // _LANE
    if n_rows <= max_block_rows:
        block_rows = n_rows                 # single tile == full array (any row count ok)
    else:
        block_rows = max_block_rows         # multiple of 8; ragged last block is masked
    grid = (pl.cdiv(n_rows, block_rows),)

    n_arr = jnp.array([n], dtype=jnp.int32)
    kernel = functools.partial(_rmse_kernel, n_subjects=n_subjects)

    data_spec = pl.BlockSpec((block_rows, _LANE), lambda i, n_ref: (i, 0))

    out = pl.pallas_call(
        kernel,
        out_shape=jax.ShapeDtypeStruct((1, 1), jnp.float32),
        grid_spec=pltpu.PrefetchScalarGridSpec(
            num_scalar_prefetch=1,
            grid=grid,
            in_specs=[
                data_spec,                                      # sub
                data_spec,                                      # y
                data_spec,                                      # j
                data_spec,                                      # k
                pl.BlockSpec(memory_space=pltpu.MemorySpace.SMEM),  # params table
            ],
            out_specs=pl.BlockSpec((1, 1), lambda i, n_ref: (0, 0),
                                   memory_space=pltpu.MemorySpace.SMEM),
            scratch_shapes=[pltpu.VMEM((8, _LANE), jnp.float32)],
        ),
        compiler_params=pltpu.CompilerParams(
            dimension_semantics=("arbitrary",),
            vmem_limit_bytes=32 * 1024 * 1024),
    )(n_arr, sub2, y2, j2, k2, params)
    return out[0, 0]


def first_model_loss_ref(y, j, k, sub, A, U, Lambda, Gamma1):
    """Pure-JAX reference (mirrors the PyTorch forward)."""
    Ar = jax.nn.relu(A)
    Ur = jax.nn.relu(U)
    Lr = jax.nn.sigmoid(Lambda) * 0.2
    Gr = jax.nn.sigmoid(Gamma1)
    mu = Ar[sub] - Ur[sub] * jnp.exp(-Lr[sub] * (j + Gr[sub] * k))
    return jnp.sqrt(jnp.mean((y - mu) ** 2))


if __name__ == "__main__":
    key = jax.random.PRNGKey(0)
    subjectcount = 16
    n_obs = 512

    k_y, k_j, k_k, k_sub, k_A, k_U, k_L, k_G = jax.random.split(key, 8)

    y = jax.random.normal(k_y, (n_obs,), dtype=jnp.float32) * 2.0 + 5.0
    j = jax.random.uniform(k_j, (n_obs,), dtype=jnp.float32, minval=0.0, maxval=10.0)
    k_time = jax.random.uniform(k_k, (n_obs,), dtype=jnp.float32, minval=0.0, maxval=5.0)
    sub = jax.random.randint(k_sub, (n_obs,), 0, subjectcount)

    # Parameter init matching the module's __init__.
    y_mean = jnp.mean(y)
    A = jax.random.normal(k_A, (subjectcount,), dtype=jnp.float32) + y_mean
    U = jax.random.normal(k_U, (subjectcount,), dtype=jnp.float32) + y_mean
    Lambda = jax.random.uniform(k_L, (subjectcount,), dtype=jnp.float32)
    Gamma1 = jax.random.uniform(k_G, (subjectcount,), dtype=jnp.float32)

    # Case 1: N multiple of 128 -> single dense (4, 128) tile, no padding copies.
    loss = jax.block_until_ready(first_model_loss(y, j, k_time, sub, A, U, Lambda, Gamma1))
    loss_ref = first_model_loss_ref(y, j, k_time, sub, A, U, Lambda, Gamma1)
    assert jnp.allclose(loss, loss_ref, rtol=1e-5, atol=1e-5), (loss, loss_ref)

    # Case 2: ragged N (300) -> lane padding + in-kernel mask.
    n_odd = 300
    loss_odd = jax.block_until_ready(first_model_loss(
        y[:n_odd], j[:n_odd], k_time[:n_odd], sub[:n_odd], A, U, Lambda, Gamma1))
    loss_odd_ref = first_model_loss_ref(
        y[:n_odd], j[:n_odd], k_time[:n_odd], sub[:n_odd], A, U, Lambda, Gamma1)
    assert jnp.allclose(loss_odd, loss_odd_ref, rtol=1e-5, atol=1e-5), (loss_odd, loss_odd_ref)

    # Case 3: force a multi-step grid with a ragged last block (small max_block_rows)
    # to exercise the accumulator carry + boundary masking paths.
    n_multi = 3149  # 25 rows of 128 lanes (ragged), 4 grid steps of 8 rows
    loss_m = jax.block_until_ready(first_model_loss(
        jnp.tile(y, 7)[:n_multi], jnp.tile(j, 7)[:n_multi], jnp.tile(k_time, 7)[:n_multi],
        jnp.tile(sub, 7)[:n_multi], A, U, Lambda, Gamma1, max_block_rows=8))
    loss_m_ref = first_model_loss_ref(
        jnp.tile(y, 7)[:n_multi], jnp.tile(j, 7)[:n_multi], jnp.tile(k_time, 7)[:n_multi],
        jnp.tile(sub, 7)[:n_multi], A, U, Lambda, Gamma1)
    assert jnp.allclose(loss_m, loss_m_ref, rtol=1e-5, atol=1e-5), (loss_m, loss_m_ref)

    print("KERNEL_OK")
</pallas_src>

<mosaic_0001>
module attributes {stable_mosaic.version = 11 : i64} {
  func.func @_rmse_kernel(%arg0: i32, %arg1: memref<1xi32, #tpu.memory_space<smem>>, %arg2: memref<4x128xi32, #tpu.memory_space<vmem>>, %arg3: memref<4x128xf32, #tpu.memory_space<vmem>>, %arg4: memref<4x128xf32, #tpu.memory_space<vmem>>, %arg5: memref<4x128xf32, #tpu.memory_space<vmem>>, %arg6: memref<4x16xf32, #tpu.memory_space<smem>>, %arg7: memref<1x1xf32, #tpu.memory_space<smem>>, %arg8: memref<8x128xf32, #tpu.memory_space<vmem>>) attributes {dimension_semantics = [#tpu.dimension_semantics<arbitrary>], iteration_bounds = array<i64: 1>, scalar_prefetch = 1 : i64, scratch_operands = 1 : i64, tpu.core_type = #tpu.core_type<tc>, window_params = [{transform_indices = @transform_0, window_bounds = array<i64: 4, 128>}, {transform_indices = @transform_1, window_bounds = array<i64: 4, 128>}, {transform_indices = @transform_2, window_bounds = array<i64: 4, 128>}, {transform_indices = @transform_3, window_bounds = array<i64: 4, 128>}, {transform_indices = @transform_4, window_bounds = array<i64: 4, 16>}, {transform_indices = @transform_5, window_bounds = array<i64: 1, 1>}]} {
    %c0_i32 = arith.constant 0 : i32
    %0 = arith.cmpi eq, %arg0, %c0_i32 : i32
    %1 = arith.extui %0 : i1 to i32
    %c0_i32_0 = arith.constant 0 : i32
    %2 = arith.cmpi ne, %1, %c0_i32_0 : i32
    scf.if %2 {
      %cst_135 = arith.constant 0.000000e+00 : f32
      %264 = vector.broadcast %cst_135 : f32 to vector<8x128xf32>
      %c0_136 = arith.constant 0 : index
      %c0_137 = arith.constant 0 : index
      %265 = vector.load %arg8[%c0_136, %c0_137] : memref<8x128xf32, #tpu.memory_space<vmem>>, vector<8x128xf32>
      tpu.vector_store %arg8[%c0_136, %c0_137], %264 {strides = array<i32>} : memref<8x128xf32, #tpu.memory_space<vmem>>, vector<8x128xf32>,
    } else {
    }
    %c0 = arith.constant 0 : index
    %c0_1 = arith.constant 0 : index
    %3 = vector.load %arg2[%c0, %c0_1] : memref<4x128xi32, #tpu.memory_space<vmem>>, vector<4x128xi32>
    %c0_2 = arith.constant 0 : index
    %c0_3 = arith.constant 0 : index
    %4 = vector.load %arg3[%c0_2, %c0_3] : memref<4x128xf32, #tpu.memory_space<vmem>>, vector<4x128xf32>
    %c0_4 = arith.constant 0 : index
    %c0_5 = arith.constant 0 : index
    %5 = vector.load %arg4[%c0_4, %c0_5] : memref<4x128xf32, #tpu.memory_space<vmem>>, vector<4x128xf32>
    %c0_6 = arith.constant 0 : index
    %c0_7 = arith.constant 0 : index
    %6 = vector.load %arg5[%c0_6, %c0_7] : memref<4x128xf32, #tpu.memory_space<vmem>>, vector<4x128xf32>
    %cst = arith.constant 0.000000e+00 : f32
    %7 = vector.broadcast %cst : f32 to vector<4x128xf32>
    %cst_8 = arith.constant 0.000000e+00 : f32
    %8 = vector.broadcast %cst_8 : f32 to vector<4x128xf32>
    %cst_9 = arith.constant 0.000000e+00 : f32
    %9 = vector.broadcast %cst_9 : f32 to vector<4x128xf32>
    %cst_10 = arith.constant 0.000000e+00 : f32
    %10 = vector.broadcast %cst_10 : f32 to vector<4x128xf32>
    %c0_i32_11 = arith.constant 0 : i32
    %11 = vector.broadcast %c0_i32_11 : i32 to vector<4x128xi32>
    %12 = arith.cmpi eq, %3, %11 : vector<4x128xi32>
    %c0_12 = arith.constant 0 : index
    %c0_13 = arith.constant 0 : index
    %13 = memref.load %arg6[%c0_12, %c0_13] : memref<4x16xf32, #tpu.memory_space<smem>>
    %14 = vector.broadcast %13 : f32 to vector<4x128xf32>
    %15 = arith.select %12, %14, %7 : vector<4x128xi1>, vector<4x128xf32>
    %c1 = arith.constant 1 : index
    %c0_14 = arith.constant 0 : index
    %16 = memref.load %arg6[%c1, %c0_14] : memref<4x16xf32, #tpu.memory_space<smem>>
    %17 = vector.broadcast %16 : f32 to vector<4x128xf32>
    %18 = arith.select %12, %17, %8 : vector<4x128xi1>, vector<4x128xf32>
    %c2 = arith.constant 2 : index
    %c0_15 = arith.constant 0 : index
    %19 = memref.load %arg6[%c2, %c0_15] : memref<4x16xf32, #tpu.memory_space<smem>>
    %20 = vector.broadcast %19 : f32 to vector<4x128xf32>
    %21 = arith.select %12, %20, %9 : vector<4x128xi1>, vector<4x128xf32>
    %c3 = arith.constant 3 : index
    %c0_16 = arith.constant 0 : index
    %22 = memref.load %arg6[%c3, %c0_16] : memref<4x16xf32, #tpu.memory_space<smem>>
    %23 = vector.broadcast %22 : f32 to vector<4x128xf32>
    %24 = arith.select %12, %23, %10 : vector<4x128xi1>, vector<4x128xf32>
    %c1_i32 = arith.constant 1 : i32
    %25 = vector.broadcast %c1_i32 : i32 to vector<4x128xi32>
    %26 = arith.cmpi eq, %3, %25 : vector<4x128xi32>
    %c0_17 = arith.constant 0 : index
    %c1_18 = arith.constant 1 : index
    %27 = memref.load %arg6[%c0_17, %c1_18] : memref<4x16xf32, #tpu.memory_space<smem>>
    %28 = vector.broadcast %27 : f32 to vector<4x128xf32>
    %29 = arith.select %26, %28, %15 : vector<4x128xi1>, vector<4x128xf32>
    %c1_19 = arith.constant 1 : index
    %c1_20 = arith.constant 1 : index
    %30 = memref.load %arg6[%c1_19, %c1_20] : memref<4x16xf32, #tpu.memory_space<smem>>
    %31 = vector.broadcast %30 : f32 to vector<4x128xf32>
    %32 = arith.select %26, %31, %18 : vector<4x128xi1>, vector<4x128xf32>
    %c2_21 = arith.constant 2 : index
    %c1_22 = arith.constant 1 : index
    %33 = memref.load %arg6[%c2_21, %c1_22] : memref<4x16xf32, #tpu.memory_space<smem>>
    %34 = vector.broadcast %33 : f32 to vector<4x128xf32>
    %35 = arith.select %26, %34, %21 : vector<4x128xi1>, vector<4x128xf32>
    %c3_23 = arith.constant 3 : index
    %c1_24 = arith.constant 1 : index
    %36 = memref.load %arg6[%c3_23, %c1_24] : memref<4x16xf32, #tpu.memory_space<smem>>
    %37 = vector.broadcast %36 : f32 to vector<4x128xf32>
    %38 = arith.select %26, %37, %24 : vector<4x128xi1>, vector<4x128xf32>
    %c2_i32 = arith.constant 2 : i32
    %39 = vector.broadcast %c2_i32 : i32 to vector<4x128xi32>
    %40 = arith.cmpi eq, %3, %39 : vector<4x128xi32>
    %c0_25 = arith.constant 0 : index
    %c2_26 = arith.constant 2 : index
    %41 = memref.load %arg6[%c0_25, %c2_26] : memref<4x16xf32, #tpu.memory_space<smem>>
    %42 = vector.broadcast %41 : f32 to vector<4x128xf32>
    %43 = arith.select %40, %42, %29 : vector<4x128xi1>, vector<4x128xf32>
    %c1_27 = arith.constant 1 : index
    %c2_28 = arith.constant 2 : index
    %44 = memref.load %arg6[%c1_27, %c2_28] : memref<4x16xf32, #tpu.memory_space<smem>>
    %45 = vector.broadcast %44 : f32 to vector<4x128xf32>
    %46 = arith.select %40, %45, %32 : vector<4x128xi1>, vector<4x128xf32>
    %c2_29 = arith.constant 2 : index
    %c2_30 = arith.constant 2 : index
    %47 = memref.load %arg6[%c2_29, %c2_30] : memref<4x16xf32, #tpu.memory_space<smem>>
    %48 = vector.broadcast %47 : f32 to vector<4x128xf32>
    %49 = arith.select %40, %48, %35 : vector<4x128xi1>, vector<4x128xf32>
    %c3_31 = arith.constant 3 : index
    %c2_32 = arith.constant 2 : index
    %50 = memref.load %arg6[%c3_31, %c2_32] : memref<4x16xf32, #tpu.memory_space<smem>>
    %51 = vector.broadcast %50 : f32 to vector<4x128xf32>
    %52 = arith.select %40, %51, %38 : vector<4x128xi1>, vector<4x128xf32>
    %c3_i32 = arith.constant 3 : i32
    %53 = vector.broadcast %c3_i32 : i32 to vector<4x128xi32>
    %54 = arith.cmpi eq, %3, %53 : vector<4x128xi32>
    %c0_33 = arith.constant 0 : index
    %c3_34 = arith.constant 3 : index
    %55 = memref.load %arg6[%c0_33, %c3_34] : memref<4x16xf32, #tpu.memory_space<smem>>
    %56 = vector.broadcast %55 : f32 to vector<4x128xf32>
    %57 = arith.select %54, %56, %43 : vector<4x128xi1>, vector<4x128xf32>
    %c1_35 = arith.constant 1 : index
    %c3_36 = arith.constant 3 : index
    %58 = memref.load %arg6[%c1_35, %c3_36] : memref<4x16xf32, #tpu.memory_space<smem>>
    %59 = vector.broadcast %58 : f32 to vector<4x128xf32>
    %60 = arith.select %54, %59, %46 : vector<4x128xi1>, vector<4x128xf32>
    %c2_37 = arith.constant 2 : index
    %c3_38 = arith.constant 3 : index
    %61 = memref.load %arg6[%c2_37, %c3_38] : memref<4x16xf32, #tpu.memory_space<smem>>
    %62 = vector.broadcast %61 : f32 to vector<4x128xf32>
    %63 = arith.select %54, %62, %49 : vector<4x128xi1>, vector<4x128xf32>
    %c3_39 = arith.constant 3 : index
    %c3_40 = arith.constant 3 : index
    %64 = memref.load %arg6[%c3_39, %c3_40] : memref<4x16xf32, #tpu.memory_space<smem>>
    %65 = vector.broadcast %64 : f32 to vector<4x128xf32>
    %66 = arith.select %54, %65, %52 : vector<4x128xi1>, vector<4x128xf32>
    %c4_i32 = arith.constant 4 : i32
    %67 = vector.broadcast %c4_i32 : i32 to vector<4x128xi32>
    %68 = arith.cmpi eq, %3, %67 : vector<4x128xi32>
    %c0_41 = arith.constant 0 : index
    %c4 = arith.constant 4 : index
    %69 = memref.load %arg6[%c0_41, %c4] : memref<4x16xf32, #tpu.memory_space<smem>>
    %70 = vector.broadcast %69 : f32 to vector<4x128xf32>
    %71 = arith.select %68, %70, %57 : vector<4x128xi1>, vector<4x128xf32>
    %c1_42 = arith.constant 1 : index
    %c4_43 = arith.constant 4 : index
    %72 = memref.load %arg6[%c1_42, %c4_43] : memref<4x16xf32, #tpu.memory_space<smem>>
    %73 = vector.broadcast %72 : f32 to vector<4x128xf32>
    %74 = arith.select %68, %73, %60 : vector<4x128xi1>, vector<4x128xf32>
    %c2_44 = arith.constant 2 : index
    %c4_45 = arith.constant 4 : index
    %75 = memref.load %arg6[%c2_44, %c4_45] : memref<4x16xf32, #tpu.memory_space<smem>>
    %76 = vector.broadcast %75 : f32 to vector<4x128xf32>
    %77 = arith.select %68, %76, %63 : vector<4x128xi1>, vector<4x128xf32>
    %c3_46 = arith.constant 3 : index
    %c4_47 = arith.constant 4 : index
    %78 = memref.load %arg6[%c3_46, %c4_47] : memref<4x16xf32, #tpu.memory_space<smem>>
    %79 = vector.broadcast %78 : f32 to vector<4x128xf32>
    %80 = arith.select %68, %79, %66 : vector<4x128xi1>, vector<4x128xf32>
    %c5_i32 = arith.constant 5 : i32
    %81 = vector.broadcast %c5_i32 : i32 to vector<4x128xi32>
    %82 = arith.cmpi eq, %3, %81 : vector<4x128xi32>
    %c0_48 = arith.constant 0 : index
    %c5 = arith.constant 5 : index
    %83 = memref.load %arg6[%c0_48, %c5] : memref<4x16xf32, #tpu.memory_space<smem>>
    %84 = vector.broadcast %83 : f32 to vector<4x128xf32>
    %85 = arith.select %82, %84, %71 : vector<4x128xi1>, vector<4x128xf32>
    %c1_49 = arith.constant 1 : index
    %c5_50 = arith.constant 5 : index
    %86 = memref.load %arg6[%c1_49, %c5_50] : memref<4x16xf32, #tpu.memory_space<smem>>
    %87 = vector.broadcast %86 : f32 to vector<4x128xf32>
    %88 = arith.select %82, %87, %74 : vector<4x128xi1>, vector<4x128xf32>
    %c2_51 = arith.constant 2 : index
    %c5_52 = arith.constant 5 : index
    %89 = memref.load %arg6[%c2_51, %c5_52] : memref<4x16xf32, #tpu.memory_space<smem>>
    %90 = vector.broadcast %89 : f32 to vector<4x128xf32>
    %91 = arith.select %82, %90, %77 : vector<4x128xi1>, vector<4x128xf32>
    %c3_53 = arith.constant 3 : index
    %c5_54 = arith.constant 5 : index
    %92 = memref.load %arg6[%c3_53, %c5_54] : memref<4x16xf32, #tpu.memory_space<smem>>
    %93 = vector.broadcast %92 : f32 to vector<4x128xf32>
    %94 = arith.select %82, %93, %80 : vector<4x128xi1>, vector<4x128xf32>
    %c6_i32 = arith.constant 6 : i32
    %95 = vector.broadcast %c6_i32 : i32 to vector<4x128xi32>
    %96 = arith.cmpi eq, %3, %95 : vector<4x128xi32>
    %c0_55 = arith.constant 0 : index
    %c6 = arith.constant 6 : index
    %97 = memref.load %arg6[%c0_55, %c6] : memref<4x16xf32, #tpu.memory_space<smem>>
    %98 = vector.broadcast %97 : f32 to vector<4x128xf32>
    %99 = arith.select %96, %98, %85 : vector<4x128xi1>, vector<4x128xf32>
    %c1_56 = arith.constant 1 : index
    %c6_57 = arith.constant 6 : index
    %100 = memref.load %arg6[%c1_56, %c6_57] : memref<4x16xf32, #tpu.memory_space<smem>>
    %101 = vector.broadcast %100 : f32 to vector<4x128xf32>
    %102 = arith.select %96, %101, %88 : vector<4x128xi1>, vector<4x128xf32>
    %c2_58 = arith.constant 2 : index
    %c6_59 = arith.constant 6 : index
    %103 = memref.load %arg6[%c2_58, %c6_59] : memref<4x16xf32, #tpu.memory_space<smem>>
    %104 = vector.broadcast %103 : f32 to vector<4x128xf32>
    %105 = arith.select %96, %104, %91 : vector<4x128xi1>, vector<4x128xf32>
    %c3_60 = arith.constant 3 : index
    %c6_61 = arith.constant 6 : index
    %106 = memref.load %arg6[%c3_60, %c6_61] : memref<4x16xf32, #tpu.memory_space<smem>>
    %107 = vector.broadcast %106 : f32 to vector<4x128xf32>
    %108 = arith.select %96, %107, %94 : vector<4x128xi1>, vector<4x128xf32>
    %c7_i32 = arith.constant 7 : i32
    %109 = vector.broadcast %c7_i32 : i32 to vector<4x128xi32>
    %110 = arith.cmpi eq, %3, %109 : vector<4x128xi32>
    %c0_62 = arith.constant 0 : index
    %c7 = arith.constant 7 : index
    %111 = memref.load %arg6[%c0_62, %c7] : memref<4x16xf32, #tpu.memory_space<smem>>
    %112 = vector.broadcast %111 : f32 to vector<4x128xf32>
    %113 = arith.select %110, %112, %99 : vector<4x128xi1>, vector<4x128xf32>
    %c1_63 = arith.constant 1 : index
    %c7_64 = arith.constant 7 : index
    %114 = memref.load %arg6[%c1_63, %c7_64] : memref<4x16xf32, #tpu.memory_space<smem>>
    %115 = vector.broadcast %114 : f32 to vector<4x128xf32>
    %116 = arith.select %110, %115, %102 : vector<4x128xi1>, vector<4x128xf32>
    %c2_65 = arith.constant 2 : index
    %c7_66 = arith.constant 7 : index
    %117 = memref.load %arg6[%c2_65, %c7_66] : memref<4x16xf32, #tpu.memory_space<smem>>
    %118 = vector.broadcast %117 : f32 to vector<4x128xf32>
    %119 = arith.select %110, %118, %105 : vector<4x128xi1>, vector<4x128xf32>
    %c3_67 = arith.constant 3 : index
    %c7_68 = arith.constant 7 : index
    %120 = memref.load %arg6[%c3_67, %c7_68] : memref<4x16xf32, #tpu.memory_space<smem>>
    %121 = vector.broadcast %120 : f32 to vector<4x128xf32>
    %122 = arith.select %110, %121, %108 : vector<4x128xi1>, vector<4x128xf32>
    %c8_i32 = arith.constant 8 : i32
    %123 = vector.broadcast %c8_i32 : i32 to vector<4x128xi32>
    %124 = arith.cmpi eq, %3, %123 : vector<4x128xi32>
    %c0_69 = arith.constant 0 : index
    %c8 = arith.constant 8 : index
    %125 = memref.load %arg6[%c0_69, %c8] : memref<4x16xf32, #tpu.memory_space<smem>>
    %126 = vector.broadcast %125 : f32 to vector<4x128xf32>
    %127 = arith.select %124, %126, %113 : vector<4x128xi1>, vector<4x128xf32>
    %c1_70 = arith.constant 1 : index
    %c8_71 = arith.constant 8 : index
    %128 = memref.load %arg6[%c1_70, %c8_71] : memref<4x16xf32, #tpu.memory_space<smem>>
    %129 = vector.broadcast %128 : f32 to vector<4x128xf32>
    %130 = arith.select %124, %129, %116 : vector<4x128xi1>, vector<4x128xf32>
    %c2_72 = arith.constant 2 : index
    %c8_73 = arith.constant 8 : index
    %131 = memref.load %arg6[%c2_72, %c8_73] : memref<4x16xf32, #tpu.memory_space<smem>>
    %132 = vector.broadcast %131 : f32 to vector<4x128xf32>
    %133 = arith.select %124, %132, %119 : vector<4x128xi1>, vector<4x128xf32>
    %c3_74 = arith.constant 3 : index
    %c8_75 = arith.constant 8 : index
    %134 = memref.load %arg6[%c3_74, %c8_75] : memref<4x16xf32, #tpu.memory_space<smem>>
    %135 = vector.broadcast %134 : f32 to vector<4x128xf32>
    %136 = arith.select %124, %135, %122 : vector<4x128xi1>, vector<4x128xf32>
    %c9_i32 = arith.constant 9 : i32
    %137 = vector.broadcast %c9_i32 : i32 to vector<4x128xi32>
    %138 = arith.cmpi eq, %3, %137 : vector<4x128xi32>
    %c0_76 = arith.constant 0 : index
    %c9 = arith.constant 9 : index
    %139 = memref.load %arg6[%c0_76, %c9] : memref<4x16xf32, #tpu.memory_space<smem>>
    %140 = vector.broadcast %139 : f32 to vector<4x128xf32>
    %141 = arith.select %138, %140, %127 : vector<4x128xi1>, vector<4x128xf32>
    %c1_77 = arith.constant 1 : index
    %c9_78 = arith.constant 9 : index
    %142 = memref.load %arg6[%c1_77, %c9_78] : memref<4x16xf32, #tpu.memory_space<smem>>
    %143 = vector.broadcast %142 : f32 to vector<4x128xf32>
    %144 = arith.select %138, %143, %130 : vector<4x128xi1>, vector<4x128xf32>
    %c2_79 = arith.constant 2 : index
    %c9_80 = arith.constant 9 : index
    %145 = memref.load %arg6[%c2_79, %c9_80] : memref<4x16xf32, #tpu.memory_space<smem>>
    %146 = vector.broadcast %145 : f32 to vector<4x128xf32>
    %147 = arith.select %138, %146, %133 : vector<4x128xi1>, vector<4x128xf32>
    %c3_81 = arith.constant 3 : index
    %c9_82 = arith.constant 9 : index
    %148 = memref.load %arg6[%c3_81, %c9_82] : memref<4x16xf32, #tpu.memory_space<smem>>
    %149 = vector.broadcast %148 : f32 to vector<4x128xf32>
    %150 = arith.select %138, %149, %136 : vector<4x128xi1>, vector<4x128xf32>
    %c10_i32 = arith.constant 10 : i32
    %151 = vector.broadcast %c10_i32 : i32 to vector<4x128xi32>
    %152 = arith.cmpi eq, %3, %151 : vector<4x128xi32>
    %c0_83 = arith.constant 0 : index
    %c10 = arith.constant 10 : index
    %153 = memref.load %arg6[%c0_83, %c10] : memref<4x16xf32, #tpu.memory_space<smem>>
    %154 = vector.broadcast %153 : f32 to vector<4x128xf32>
    %155 = arith.select %152, %154, %141 : vector<4x128xi1>, vector<4x128xf32>
    %c1_84 = arith.constant 1 : index
    %c10_85 = arith.constant 10 : index
    %156 = memref.load %arg6[%c1_84, %c10_85] : memref<4x16xf32, #tpu.memory_space<smem>>
    %157 = vector.broadcast %156 : f32 to vector<4x128xf32>
    %158 = arith.select %152, %157, %144 : vector<4x128xi1>, vector<4x128xf32>
    %c2_86 = arith.constant 2 : index
    %c10_87 = arith.constant 10 : index
    %159 = memref.load %arg6[%c2_86, %c10_87] : memref<4x16xf32, #tpu.memory_space<smem>>
    %160 = vector.broadcast %159 : f32 to vector<4x128xf32>
    %161 = arith.select %152, %160, %147 : vector<4x128xi1>, vector<4x128xf32>
    %c3_88 = arith.constant 3 : index
    %c10_89 = arith.constant 10 : index
    %162 = memref.load %arg6[%c3_88, %c10_89] : memref<4x16xf32, #tpu.memory_space<smem>>
    %163 = vector.broadcast %162 : f32 to vector<4x128xf32>
    %164 = arith.select %152, %163, %150 : vector<4x128xi1>, vector<4x128xf32>
    %c11_i32 = arith.constant 11 : i32
    %165 = vector.broadcast %c11_i32 : i32 to vector<4x128xi32>
    %166 = arith.cmpi eq, %3, %165 : vector<4x128xi32>
    %c0_90 = arith.constant 0 : index
    %c11 = arith.constant 11 : index
    %167 = memref.load %arg6[%c0_90, %c11] : memref<4x16xf32, #tpu.memory_space<smem>>
    %168 = vector.broadcast %167 : f32 to vector<4x128xf32>
    %169 = arith.select %166, %168, %155 : vector<4x128xi1>, vector<4x128xf32>
    %c1_91 = arith.constant 1 : index
    %c11_92 = arith.constant 11 : index
    %170 = memref.load %arg6[%c1_91, %c11_92] : memref<4x16xf32, #tpu.memory_space<smem>>
    %171 = vector.broadcast %170 : f32 to vector<4x128xf32>
    %172 = arith.select %166, %171, %158 : vector<4x128xi1>, vector<4x128xf32>
    %c2_93 = arith.constant 2 : index
    %c11_94 = arith.constant 11 : index
    %173 = memref.load %arg6[%c2_93, %c11_94] : memref<4x16xf32, #tpu.memory_space<smem>>
    %174 = vector.broadcast %173 : f32 to vector<4x128xf32>
    %175 = arith.select %166, %174, %161 : vector<4x128xi1>, vector<4x128xf32>
    %c3_95 = arith.constant 3 : index
    %c11_96 = arith.constant 11 : index
    %176 = memref.load %arg6[%c3_95, %c11_96] : memref<4x16xf32, #tpu.memory_space<smem>>
    %177 = vector.broadcast %176 : f32 to vector<4x128xf32>
    %178 = arith.select %166, %177, %164 : vector<4x128xi1>, vector<4x128xf32>
    %c12_i32 = arith.constant 12 : i32
    %179 = vector.broadcast %c12_i32 : i32 to vector<4x128xi32>
    %180 = arith.cmpi eq, %3, %179 : vector<4x128xi32>
    %c0_97 = arith.constant 0 : index
    %c12 = arith.constant 12 : index
    %181 = memref.load %arg6[%c0_97, %c12] : memref<4x16xf32, #tpu.memory_space<smem>>
    %182 = vector.broadcast %181 : f32 to vector<4x128xf32>
    %183 = arith.select %180, %182, %169 : vector<4x128xi1>, vector<4x128xf32>
    %c1_98 = arith.constant 1 : index
    %c12_99 = arith.constant 12 : index
    %184 = memref.load %arg6[%c1_98, %c12_99] : memref<4x16xf32, #tpu.memory_space<smem>>
    %185 = vector.broadcast %184 : f32 to vector<4x128xf32>
    %186 = arith.select %180, %185, %172 : vector<4x128xi1>, vector<4x128xf32>
    %c2_100 = arith.constant 2 : index
    %c12_101 = arith.constant 12 : index
    %187 = memref.load %arg6[%c2_100, %c12_101] : memref<4x16xf32, #tpu.memory_space<smem>>
    %188 = vector.broadcast %187 : f32 to vector<4x128xf32>
    %189 = arith.select %180, %188, %175 : vector<4x128xi1>, vector<4x128xf32>
    %c3_102 = arith.constant 3 : index
    %c12_103 = arith.constant 12 : index
    %190 = memref.load %arg6[%c3_102, %c12_103] : memref<4x16xf32, #tpu.memory_space<smem>>
    %191 = vector.broadcast %190 : f32 to vector<4x128xf32>
    %192 = arith.select %180, %191, %178 : vector<4x128xi1>, vector<4x128xf32>
    %c13_i32 = arith.constant 13 : i32
    %193 = vector.broadcast %c13_i32 : i32 to vector<4x128xi32>
    %194 = arith.cmpi eq, %3, %193 : vector<4x128xi32>
    %c0_104 = arith.constant 0 : index
    %c13 = arith.constant 13 : index
    %195 = memref.load %arg6[%c0_104, %c13] : memref<4x16xf32, #tpu.memory_space<smem>>
    %196 = vector.broadcast %195 : f32 to vector<4x128xf32>
    %197 = arith.select %194, %196, %183 : vector<4x128xi1>, vector<4x128xf32>
    %c1_105 = arith.constant 1 : index
    %c13_106 = arith.constant 13 : index
    %198 = memref.load %arg6[%c1_105, %c13_106] : memref<4x16xf32, #tpu.memory_space<smem>>
    %199 = vector.broadcast %198 : f32 to vector<4x128xf32>
    %200 = arith.select %194, %199, %186 : vector<4x128xi1>, vector<4x128xf32>
    %c2_107 = arith.constant 2 : index
    %c13_108 = arith.constant 13 : index
    %201 = memref.load %arg6[%c2_107, %c13_108] : memref<4x16xf32, #tpu.memory_space<smem>>
    %202 = vector.broadcast %201 : f32 to vector<4x128xf32>
    %203 = arith.select %194, %202, %189 : vector<4x128xi1>, vector<4x128xf32>
    %c3_109 = arith.constant 3 : index
    %c13_110 = arith.constant 13 : index
    %204 = memref.load %arg6[%c3_109, %c13_110] : memref<4x16xf32, #tpu.memory_space<smem>>
    %205 = vector.broadcast %204 : f32 to vector<4x128xf32>
    %206 = arith.select %194, %205, %192 : vector<4x128xi1>, vector<4x128xf32>
    %c14_i32 = arith.constant 14 : i32
    %207 = vector.broadcast %c14_i32 : i32 to vector<4x128xi32>
    %208 = arith.cmpi eq, %3, %207 : vector<4x128xi32>
    %c0_111 = arith.constant 0 : index
    %c14 = arith.constant 14 : index
    %209 = memref.load %arg6[%c0_111, %c14] : memref<4x16xf32, #tpu.memory_space<smem>>
    %210 = vector.broadcast %209 : f32 to vector<4x128xf32>
    %211 = arith.select %208, %210, %197 : vector<4x128xi1>, vector<4x128xf32>
    %c1_112 = arith.constant 1 : index
    %c14_113 = arith.constant 14 : index
    %212 = memref.load %arg6[%c1_112, %c14_113] : memref<4x16xf32, #tpu.memory_space<smem>>
    %213 = vector.broadcast %212 : f32 to vector<4x128xf32>
    %214 = arith.select %208, %213, %200 : vector<4x128xi1>, vector<4x128xf32>
    %c2_114 = arith.constant 2 : index
    %c14_115 = arith.constant 14 : index
    %215 = memref.load %arg6[%c2_114, %c14_115] : memref<4x16xf32, #tpu.memory_space<smem>>
    %216 = vector.broadcast %215 : f32 to vector<4x128xf32>
    %217 = arith.select %208, %216, %203 : vector<4x128xi1>, vector<4x128xf32>
    %c3_116 = arith.constant 3 : index
    %c14_117 = arith.constant 14 : index
    %218 = memref.load %arg6[%c3_116, %c14_117] : memref<4x16xf32, #tpu.memory_space<smem>>
    %219 = vector.broadcast %218 : f32 to vector<4x128xf32>
    %220 = arith.select %208, %219, %206 : vector<4x128xi1>, vector<4x128xf32>
    %c15_i32 = arith.constant 15 : i32
    %221 = vector.broadcast %c15_i32 : i32 to vector<4x128xi32>
    %222 = arith.cmpi eq, %3, %221 : vector<4x128xi32>
    %c0_118 = arith.constant 0 : index
    %c15 = arith.constant 15 : index
    %223 = memref.load %arg6[%c0_118, %c15] : memref<4x16xf32, #tpu.memory_space<smem>>
    %224 = vector.broadcast %223 : f32 to vector<4x128xf32>
    %225 = arith.select %222, %224, %211 : vector<4x128xi1>, vector<4x128xf32>
    %c1_119 = arith.constant 1 : index
    %c15_120 = arith.constant 15 : index
    %226 = memref.load %arg6[%c1_119, %c15_120] : memref<4x16xf32, #tpu.memory_space<smem>>
    %227 = vector.broadcast %226 : f32 to vector<4x128xf32>
    %228 = arith.select %222, %227, %214 : vector<4x128xi1>, vector<4x128xf32>
    %c2_121 = arith.constant 2 : index
    %c15_122 = arith.constant 15 : index
    %229 = memref.load %arg6[%c2_121, %c15_122] : memref<4x16xf32, #tpu.memory_space<smem>>
    %230 = vector.broadcast %229 : f32 to vector<4x128xf32>
    %231 = arith.select %222, %230, %217 : vector<4x128xi1>, vector<4x128xf32>
    %c3_123 = arith.constant 3 : index
    %c15_124 = arith.constant 15 : index
    %232 = memref.load %arg6[%c3_123, %c15_124] : memref<4x16xf32, #tpu.memory_space<smem>>
    %233 = vector.broadcast %232 : f32 to vector<4x128xf32>
    %234 = arith.select %222, %233, %220 : vector<4x128xi1>, vector<4x128xf32>
    %235 = arith.mulf %234, %6 : vector<4x128xf32>
    %236 = arith.addf %5, %235 : vector<4x128xf32>
    %237 = arith.mulf %231, %236 : vector<4x128xf32>
    %238 = math.exp %237 : vector<4x128xf32>
    %239 = arith.mulf %228, %238 : vector<4x128xf32>
    %240 = arith.subf %225, %239 : vector<4x128xf32>
    %241 = arith.subf %4, %240 : vector<4x128xf32>
    %242 = tpu.iota {dimensions = array<i32: 0>} : vector<4x128xi32>
    %243 = tpu.iota {dimensions = array<i32: 1>} : vector<4x128xi32>
    %c4_i32_125 = arith.constant 4 : i32
    %244 = arith.muli %arg0, %c4_i32_125 : i32
    %245 = vector.broadcast %244 : i32 to vector<4x128xi32>
    %246 = arith.addi %245, %242 : vector<4x128xi32>
    %c128_i32 = arith.constant 128 : i32
    %247 = vector.broadcast %c128_i32 : i32 to vector<4x128xi32>
    %248 = arith.muli %246, %247 : vector<4x128xi32>
    %249 = arith.addi %248, %243 : vector<4x128xi32>
    %c0_126 = arith.constant 0 : index
    %250 = memref.load %arg1[%c0_126] : memref<1xi32, #tpu.memory_space<smem>>
    %251 = vector.broadcast %250 : i32 to vector<4x128xi32>
    %252 = arith.cmpi slt, %249, %251 : vector<4x128xi32>
    %253 = arith.mulf %241, %241 : vector<4x128xf32>
    %cst_127 = arith.constant 0.000000e+00 : f32
    %254 = vector.broadcast %cst_127 : f32 to vector<4x128xf32>
    %255 = arith.select %252, %253, %254 : vector<4x128xi1>, vector<4x128xf32>
    %c0_128 = arith.constant 0 : index
    %c0_129 = arith.constant 0 : index
    %256 = vector.load %arg8[%c0_128, %c0_129] : memref<8x128xf32, #tpu.memory_space<vmem>>, vector<1x128xf32>
    %cst_130 = arith.constant dense<0.000000e+00> : vector<128xf32>
    %257 = vector.multi_reduction <add>, %255, %cst_130 [0] : vector<4x128xf32> to vector<128xf32>
    %258 = vector.shape_cast %257 : vector<128xf32> to vector<1x128xf32>
    %259 = arith.addf %256, %258 : vector<1x128xf32>
    %c0_131 = arith.constant 0 : index
    %c0_132 = arith.constant 0 : index
    %260 = vector.load %arg8[%c0_131, %c0_132] : memref<8x128xf32, #tpu.memory_space<vmem>>, vector<1x128xf32>
    tpu.vector_store %arg8[%c0_131, %c0_132], %259 {strides = array<i32>} : memref<8x128xf32, #tpu.memory_space<vmem>>, vector<1x128xf32>,
    %c0_i32_133 = arith.constant 0 : i32
    %261 = arith.cmpi eq, %arg0, %c0_i32_133 : i32
    %262 = arith.extui %261 : i1 to i32
    %c0_i32_134 = arith.constant 0 : i32
    %263 = arith.cmpi ne, %262, %c0_i32_134 : i32
    scf.if %263 {
      %c0_135 = arith.constant 0 : index
      %c0_136 = arith.constant 0 : index
      %264 = vector.load %arg8[%c0_135, %c0_136] : memref<8x128xf32, #tpu.memory_space<vmem>>, vector<8x128xf32>
      %265 = vector.shape_cast %264 : vector<8x128xf32> to vector<1x8x128xf32>
      %cst_137 = arith.constant dense<0.000000e+00> : vector<1xf32>
      %266 = vector.multi_reduction <add>, %265, %cst_137 [1, 2] : vector<1x8x128xf32> to vector<1xf32>
      %267 = vector.shape_cast %266 : vector<1xf32> to vector<1x1x1xf32>
      %268 = vector.extract %267[0, 0, 0] : f32 from vector<1x1x1xf32>
      %c0_138 = arith.constant 0 : index
      %269 = memref.load %arg1[%c0_138] : memref<1xi32, #tpu.memory_space<smem>>
      %270 = arith.sitofp %269 : i32 to f32
      %271 = arith.divf %268, %270 : f32
      %272 = math.sqrt %271 : f32
      %c0_139 = arith.constant 0 : index
      %c0_140 = arith.constant 0 : index
      %273 = memref.load %arg7[%c0_139, %c0_140] : memref<1x1xf32, #tpu.memory_space<smem>>
      memref.store %272, %arg7[%c0_139, %c0_140] : memref<1x1xf32, #tpu.memory_space<smem>>
    } else {
    }
    return
  }
  func.func @transform_0(%arg0: i32, %arg1: memref<1xi32, #tpu.memory_space<smem>>) -> (i32, i32) {
    %c0_i32 = arith.constant 0 : i32
    %c0_i32_0 = arith.constant 0 : i32
    return %arg0, %c0_i32 : i32, i32
  }
  func.func @transform_1(%arg0: i32, %arg1: memref<1xi32, #tpu.memory_space<smem>>) -> (i32, i32) {
    %c0_i32 = arith.constant 0 : i32
    %c0_i32_0 = arith.constant 0 : i32
    return %arg0, %c0_i32 : i32, i32
  }
  func.func @transform_2(%arg0: i32, %arg1: memref<1xi32, #tpu.memory_space<smem>>) -> (i32, i32) {
    %c0_i32 = arith.constant 0 : i32
    %c0_i32_0 = arith.constant 0 : i32
    return %arg0, %c0_i32 : i32, i32
  }
  func.func @transform_3(%arg0: i32, %arg1: memref<1xi32, #tpu.memory_space<smem>>) -> (i32, i32) {
    %c0_i32 = arith.constant 0 : i32
    %c0_i32_0 = arith.constant 0 : i32
    return %arg0, %c0_i32 : i32, i32
  }
  func.func @transform_4(%arg0: i32, %arg1: memref<1xi32, #tpu.memory_space<smem>>) -> (i32, i32) {
    %c0_i32 = arith.constant 0 : i32
    %c0_i32_0 = arith.constant 0 : i32
    %c0_i32_1 = arith.constant 0 : i32
    return %c0_i32, %c0_i32_0 : i32, i32
  }
  func.func @transform_5(%arg0: i32, %arg1: memref<1xi32, #tpu.memory_space<smem>>) -> (i32, i32) {
    %c0_i32 = arith.constant 0 : i32
    %c0_i32_0 = arith.constant 0 : i32
    %c0_i32_1 = arith.constant 0 : i32
    return %c0_i32, %c0_i32_0 : i32, i32
  }
}

</mosaic_0001>

<llo_original>
// kernel: tpu_custom_call.1
$region0: #{tpu_custom_call.1}
  #allocation0 [shape = 'u32[]', space=smem, size = 0x4, offset = 0x4, fixed_abs, tag = 'smem constant byte address 0x4 - core index']
  #allocation1 [shape = 'u32[144,128]{1,0:T(1,128)}', space=vmem, size = 0x12000, scoped, tag = 'internal scratch']
  #allocation2 [shape = 'f32[8,128]{1,0:T(8,128)}', space=vmem, size = 0x1000, scoped, tag = 'scratch operand']
  #allocation3 [shape = 's32[1]{0}', space=sflag, size = 0x4, scoped, tag = 'scoped memory for tpu_custom_call.1']
  #allocation4 [shape = 's32[1]{0:T(128)S(6)}', space=smem, size = 0x200, scoped, tag = 'prefetched SMEM operand 0']
  %s0 = inlined_call_operand.<no memory space> [shape: s32[1], index: 0, kind: input, shape index: {}]
  %s1 = inlined_call_operand.hbm [shape: s32[4,128], index: 1, kind: input, shape index: {}]
  %s2 = inlined_call_operand.vmem [shape: f32[4,128], index: 2, kind: input, shape index: {}]
  %s3 = inlined_call_operand.vmem [shape: f32[4,128], index: 3, kind: input, shape index: {}]
  %s4 = inlined_call_operand.vmem [shape: f32[4,128], index: 4, kind: input, shape index: {}]
  %s5 = inlined_call_operand.vmem [shape: f32[4,16], index: 5, kind: input, shape index: {}]
  %s6 = inlined_call_operand.hbm [shape: f32[1,1], index: 6, kind: output, shape index: {}]
  %s7 = sld [smem:[#allocation0]]
  $region46: #{tpu_custom_call.1} parent=0
    _
  %s9 = ssub.s32 1, %s7
  %s10 = scalar_select 0, %s9, %s7
  %11 = sst [smem:[#allocation4]] %s0
  $region1: #{tpu_custom_call.1} parent=0
    #allocation5 [shape = 'u8[2048]{0}', space=vmem, size = 0x800, scoped, tag = 'input window, operand 1, single buffered']
    #allocation6 [shape = 's32[1]{0}', space=sflag, size = 0x4, scoped, tag = 'scoped memory for tpu_custom_call.1']
    #allocation7 [shape = 's32[1]{0}', space=sflag, size = 0x4, scoped, tag = 'scoped memory for tpu_custom_call.1']
    #allocation8 [shape = 's32[1]{0}', space=sflag, size = 0x4, scoped, tag = 'scoped memory for tpu_custom_call.1']
    #allocation9 [shape = 'u8[2048]{0}', space=smem, size = 0x800, scoped, tag = 'input window, operand 5, single buffered']
    #allocation10 [shape = 'u8[512]{0}', space=smem, size = 0x200, scoped, tag = 'output window, operand 0, single buffered']
    %12 = vsyncpa [#allocation6], 0
    %13 = vsyncpa [#allocation8], 0
    %14 = vsyncpa [#allocation7], 0
    // Predicated region
    $region2: #{tpu_custom_call.1} parent=1 // pred_check
      _
    $region3: #{tpu_custom_call.1} parent=1 // pred_check_branch
      %16 = sbr.rel (0) target = $region5
    $region4: #{tpu_custom_call.1} parent=1 // pred_region
      %s18 = ssub.s32 64, 64
      %19 = vsyncadd [#allocation6], %s18
      %s21 = sshll.u32 [#allocation5], 4
      %s22 = int_to_ptr.vmem [resolvable:$true] %s21
      %24 = dma.hbm_to_vmem [thread:$0]  %s1, 64, %s22, [#allocation6]
    $region5: #{tpu_custom_call.1} parent=1 // pred_fallthru
      _
    // Predicated region
    $region6: #{tpu_custom_call.1} parent=1 // pred_check
      _
    $region7: #{tpu_custom_call.1} parent=1 // pred_check_branch
      %26 = sbr.rel (0) target = $region9
    $region8: #{tpu_custom_call.1} parent=1 // pred_region
      _
    $region9: #{tpu_custom_call.1} parent=1 // pred_fallthru
      _
    // Predicated region
    $region10: #{tpu_custom_call.1} parent=1 // pred_check
      _
    $region11: #{tpu_custom_call.1} parent=1 // pred_check_branch
      %28 = sbr.rel (0) target = $region13
    $region12: #{tpu_custom_call.1} parent=1 // pred_region
      _
    $region13: #{tpu_custom_call.1} parent=1 // pred_fallthru
      _
    // Predicated region
    $region14: #{tpu_custom_call.1} parent=1 // pred_check
      _
    $region15: #{tpu_custom_call.1} parent=1 // pred_check_branch
      %30 = sbr.rel (0) target = $region17
    $region16: #{tpu_custom_call.1} parent=1 // pred_region
      _
    $region17: #{tpu_custom_call.1} parent=1 // pred_fallthru
      _
    // Predicated region
    $region18: #{tpu_custom_call.1} parent=1 // pred_check
      _
    $region19: #{tpu_custom_call.1} parent=1 // pred_check_branch
      %32 = sbr.rel (0) target = $region21
    $region20: #{tpu_custom_call.1} parent=1 // pred_region
      %s34 = ssub.s32 64, 64
      %35 = vsyncadd [#allocation8], %s34
      %s37 = sshll.u32 %s5, 4
      %s38 = int_to_ptr.vmem [resolvable:$true] %s37
      %40 = dma.vmem_to_smem %s38, 64, [#allocation9], [#allocation8]
    $region21: #{tpu_custom_call.1} parent=1 // pred_fallthru
      _
    // Predicated region
    $region22: #{tpu_custom_call.1} parent=1 // pred_check
      _
    $region23: #{tpu_custom_call.1} parent=1 // pred_check_branch
      %42 = sbr.rel (0) target = $region25
    $region24: #{tpu_custom_call.1} parent=1 // pred_region
      %43 = dma.done [#allocation6], 64
    $region25: #{tpu_custom_call.1} parent=1 // pred_fallthru
      _
    // Predicated region
    $region26: #{tpu_custom_call.1} parent=1 // pred_check
      _
    $region27: #{tpu_custom_call.1} parent=1 // pred_check_branch
      %45 = sbr.rel (0) target = $region29
    $region28: #{tpu_custom_call.1} parent=1 // pred_region
      %46 = dma.done [#allocation8], 64
    $region29: #{tpu_custom_call.1} parent=1 // pred_fallthru
      _
    %47 = sfence
    %p48 = scmp.eq.s32.totalorder 0, 0
    // Predicated region
    $region30: #{tpu_custom_call.1} parent=1 // pred_check
      %p49 = pneg %p48
    $region31: #{tpu_custom_call.1} parent=1 // pred_check_branch
      %51 = sbr.rel (%p49) target = $region33
    $region32: #{tpu_custom_call.1} parent=1 // pred_region
      %52 = vst [vmem:[#allocation2] sm:$0xff] 0.0
    $region33: #{tpu_custom_call.1} parent=1 // pred_fallthru
      _
    %v53 = vld [vmem:[#allocation5] sm:$0xf]
    %v54 = vld [vmem:[%s2] sm:$0xf]
    %v55 = vld [vmem:[%s3] sm:$0xf]
    %v56 = vld [vmem:[%s4] sm:$0xf]
    %vm57 = vcmp.eq.s32.totalorder %v53, 0
    %s58 = sld [smem:[#allocation9]]
    %v59 = vstv %s58
    %v60 = vsel %vm57, %v59, 0.0
    %s61 = sld [smem:[#allocation9 + $0x80]]
    %v62 = vstv %s61
    %v63 = vsel %vm57, %v62, 0.0
    %s64 = sld [smem:[#allocation9 + $0x100]]
    %v65 = vstv %s64
    %v66 = vsel %vm57, %v65, 0.0
    %s67 = sld [smem:[#allocation9 + $0x180]]
    %v68 = vstv %s67
    %v69 = vsel %vm57, %v68, 0.0
    %vm70 = vcmp.eq.s32.totalorder %v53, 1
    %s71 = sld [smem:[#allocation9 + $0x1]]
    %v72 = vstv %s71
    %v73 = vsel %vm70, %v72, %v60
    %s74 = sld [smem:[#allocation9 + $0x81]]
    %v75 = vstv %s74
    %v76 = vsel %vm70, %v75, %v63
    %s77 = sld [smem:[#allocation9 + $0x101]]
    %v78 = vstv %s77
    %v79 = vsel %vm70, %v78, %v66
    %s80 = sld [smem:[#allocation9 + $0x181]]
    %v81 = vstv %s80
    %v82 = vsel %vm70, %v81, %v69
    %vm83 = vcmp.eq.s32.totalorder %v53, 2
    %s84 = sld [smem:[#allocation9 + $0x2]]
    %v85 = vstv %s84
    %v86 = vsel %vm83, %v85, %v73
    %s87 = sld [smem:[#allocation9 + $0x82]]
    %v88 = vstv %s87
    %v89 = vsel %vm83, %v88, %v76
    %s90 = sld [smem:[#allocation9 + $0x102]]
    %v91 = vstv %s90
    %v92 = vsel %vm83, %v91, %v79
    %s93 = sld [smem:[#allocation9 + $0x182]]
    %v94 = vstv %s93
    %v95 = vsel %vm83, %v94, %v82
    %vm96 = vcmp.eq.s32.totalorder %v53, 3
    %s97 = sld [smem:[#allocation9 + $0x3]]
    %v98 = vstv %s97
    %v99 = vsel %vm96, %v98, %v86
    %s100 = sld [smem:[#allocation9 + $0x83]]
    %v101 = vstv %s100
    %v102 = vsel %vm96, %v101, %v89
    %s103 = sld [smem:[#allocation9 + $0x103]]
    %v104 = vstv %s103
    %v105 = vsel %vm96, %v104, %v92
    %s106 = sld [smem:[#allocation9 + $0x183]]
    %v107 = vstv %s106
    %v108 = vsel %vm96, %v107, %v95
    %vm109 = vcmp.eq.s32.totalorder %v53, 4
    %s110 = sld [smem:[#allocation9 + $0x4]]
    %v111 = vstv %s110
    %v112 = vsel %vm109, %v111, %v99
    %s113 = sld [smem:[#allocation9 + $0x84]]
    %v114 = vstv %s113
    %v115 = vsel %vm109, %v114, %v102
    %s116 = sld [smem:[#allocation9 + $0x104]]
    %v117 = vstv %s116
    %v118 = vsel %vm109, %v117, %v105
    %s119 = sld [smem:[#allocation9 + $0x184]]
    %v120 = vstv %s119
    %v121 = vsel %vm109, %v120, %v108
    %vm122 = vcmp.eq.s32.totalorder %v53, 5
    %s123 = sld [smem:[#allocation9 + $0x5]]
    %v124 = vstv %s123
    %v125 = vsel %vm122, %v124, %v112
    %s126 = sld [smem:[#allocation9 + $0x85]]
    %v127 = vstv %s126
    %v128 = vsel %vm122, %v127, %v115
    %s129 = sld [smem:[#allocation9 + $0x105]]
    %v130 = vstv %s129
    %v131 = vsel %vm122, %v130, %v118
    %s132 = sld [smem:[#allocation9 + $0x185]]
    %v133 = vstv %s132
    %v134 = vsel %vm122, %v133, %v121
    %vm135 = vcmp.eq.s32.totalorder %v53, 6
    %s136 = sld [smem:[#allocation9 + $0x6]]
    %v137 = vstv %s136
    %v138 = vsel %vm135, %v137, %v125
    %s139 = sld [smem:[#allocation9 + $0x86]]
    %v140 = vstv %s139
    %v141 = vsel %vm135, %v140, %v128
    %s142 = sld [smem:[#allocation9 + $0x106]]
    %v143 = vstv %s142
    %v144 = vsel %vm135, %v143, %v131
    %s145 = sld [smem:[#allocation9 + $0x186]]
    %v146 = vstv %s145
    %v147 = vsel %vm135, %v146, %v134
    %vm148 = vcmp.eq.s32.totalorder %v53, 7
    %s149 = sld [smem:[#allocation9 + $0x7]]
    %v150 = vstv %s149
    %v151 = vsel %vm148, %v150, %v138
    %s152 = sld [smem:[#allocation9 + $0x87]]
    %v153 = vstv %s152
    %v154 = vsel %vm148, %v153, %v141
    %s155 = sld [smem:[#allocation9 + $0x107]]
    %v156 = vstv %s155
    %v157 = vsel %vm148, %v156, %v144
    %s158 = sld [smem:[#allocation9 + $0x187]]
    %v159 = vstv %s158
    %v160 = vsel %vm148, %v159, %v147
    %vm161 = vcmp.eq.s32.totalorder %v53, 8
    %s162 = sld [smem:[#allocation9 + $0x8]]
    %v163 = vstv %s162
    %v164 = vsel %vm161, %v163, %v151
    %s165 = sld [smem:[#allocation9 + $0x88]]
    %v166 = vstv %s165
    %v167 = vsel %vm161, %v166, %v154
    %s168 = sld [smem:[#allocation9 + $0x108]]
    %v169 = vstv %s168
    %v170 = vsel %vm161, %v169, %v157
    %s171 = sld [smem:[#allocation9 + $0x188]]
    %v172 = vstv %s171
    %v173 = vsel %vm161, %v172, %v160
    %vm174 = vcmp.eq.s32.totalorder %v53, 9
    %s175 = sld [smem:[#allocation9 + $0x9]]
    %v176 = vstv %s175
    %v177 = vsel %vm174, %v176, %v164
    %s178 = sld [smem:[#allocation9 + $0x89]]
    %v179 = vstv %s178
    %v180 = vsel %vm174, %v179, %v167
    %s181 = sld [smem:[#allocation9 + $0x109]]
    %v182 = vstv %s181
    %v183 = vsel %vm174, %v182, %v170
    %s184 = sld [smem:[#allocation9 + $0x189]]
    %v185 = vstv %s184
    %v186 = vsel %vm174, %v185, %v173
    %vm187 = vcmp.eq.s32.totalorder %v53, 10
    %s188 = sld [smem:[#allocation9 + $0xa]]
    %v189 = vstv %s188
    %v190 = vsel %vm187, %v189, %v177
    %s191 = sld [smem:[#allocation9 + $0x8a]]
    %v192 = vstv %s191
    %v193 = vsel %vm187, %v192, %v180
    %s194 = sld [smem:[#allocation9 + $0x10a]]
    %v195 = vstv %s194
    %v196 = vsel %vm187, %v195, %v183
    %s197 = sld [smem:[#allocation9 + $0x18a]]
    %v198 = vstv %s197
    %v199 = vsel %vm187, %v198, %v186
    %vm200 = vcmp.eq.s32.totalorder %v53, 11
    %s201 = sld [smem:[#allocation9 + $0xb]]
    %v202 = vstv %s201
    %v203 = vsel %vm200, %v202, %v190
    %s204 = sld [smem:[#allocation9 + $0x8b]]
    %v205 = vstv %s204
    %v206 = vsel %vm200, %v205, %v193
    %s207 = sld [smem:[#allocation9 + $0x10b]]
    %v208 = vstv %s207
    %v209 = vsel %vm200, %v208, %v196
    %s210 = sld [smem:[#allocation9 + $0x18b]]
    %v211 = vstv %s210
    %v212 = vsel %vm200, %v211, %v199
    %vm213 = vcmp.eq.s32.totalorder %v53, 12
    %s214 = sld [smem:[#allocation9 + $0xc]]
    %v215 = vstv %s214
    %v216 = vsel %vm213, %v215, %v203
    %s217 = sld [smem:[#allocation9 + $0x8c]]
    %v218 = vstv %s217
    %v219 = vsel %vm213, %v218, %v206
    %s220 = sld [smem:[#allocation9 + $0x10c]]
    %v221 = vstv %s220
    %v222 = vsel %vm213, %v221, %v209
    %s223 = sld [smem:[#allocation9 + $0x18c]]
    %v224 = vstv %s223
    %v225 = vsel %vm213, %v224, %v212
    %vm226 = vcmp.eq.s32.totalorder %v53, 13
    %s227 = sld [smem:[#allocation9 + $0xd]]
    %v228 = vstv %s227
    %v229 = vsel %vm226, %v228, %v216
    %s230 = sld [smem:[#allocation9 + $0x8d]]
    %v231 = vstv %s230
    %v232 = vsel %vm226, %v231, %v219
    %s233 = sld [smem:[#allocation9 + $0x10d]]
    %v234 = vstv %s233
    %v235 = vsel %vm226, %v234, %v222
    %s236 = sld [smem:[#allocation9 + $0x18d]]
    %v237 = vstv %s236
    %v238 = vsel %vm226, %v237, %v225
    %vm239 = vcmp.eq.s32.totalorder %v53, 14
    %s240 = sld [smem:[#allocation9 + $0xe]]
    %v241 = vstv %s240
    %v242 = vsel %vm239, %v241, %v229
    %s243 = sld [smem:[#allocation9 + $0x8e]]
    %v244 = vstv %s243
    %v245 = vsel %vm239, %v244, %v232
    %s246 = sld [smem:[#allocation9 + $0x10e]]
    %v247 = vstv %s246
    %v248 = vsel %vm239, %v247, %v235
    %s249 = sld [smem:[#allocation9 + $0x18e]]
    %v250 = vstv %s249
    %v251 = vsel %vm239, %v250, %v238
    %vm252 = vcmp.eq.s32.totalorder %v53, 15
    %s253 = sld [smem:[#allocation9 + $0xf]]
    %v254 = vstv %s253
    %v255 = vsel %vm252, %v254, %v242
    %s256 = sld [smem:[#allocation9 + $0x8f]]
    %v257 = vstv %s256
    %v258 = vsel %vm252, %v257, %v245
    %s259 = sld [smem:[#allocation9 + $0x10f]]
    %v260 = vstv %s259
    %v261 = vsel %vm252, %v260, %v248
    %s262 = sld [smem:[#allocation9 + $0x18f]]
    %v263 = vstv %s262
    %v264 = vsel %vm252, %v263, %v251
    %v265 = vmul.f32 %v264, %v56
    %v266 = vadd.f32 %v55, %v265
    %v267 = vmul.f32 %v261, %v266
    %v268 = vmul.f32 %v267, 1.442695
    %v269 = vpow.pop %v268
    %v270 = vmul.f32 %v258, %v269
    %v271 = vsub.f32 %v255, %v270
    %v272 = vsub.f32 %v54, %v271
    %v273 = vlaneseq
    %v274 = vshrl.u32 %v273, 7
    %v275 = vlaneseq
    %v276 = vand.u32 %v275, 127
    %s277 = smul.u32 0, 4
    %v278 = vstv %s277
    %v279 = vadd.s32 %v278, %v274
    %v280 = vmul.u32 %v279, 128
    %v281 = vadd.s32 %v280, %v276
    %s282 = sld [smem:[#allocation4]]
    %v283 = vstv %s282
    %vm284 = vcmp.lt.s32.totalorder %v281, %v283
    %v285 = vmul.f32 %v272, %v272
    %v286 = vsel %vm284, %v285, 0.0
    %v287 = vld [vmem:[#allocation2] sm:$0x1]
    %vm288 = vcmask 1043456
    %v289 = vsel %vm288, %v286, 0.0
    %v290 = vrot.slane %v289, 4
    %v291 = vadd.f32 %v289, %v290
    %v292 = vrot.slane %v291, 2
    %v293 = vadd.f32 %v291, %v292
    %v294 = vrot.slane %v293, 1
    %v295 = vadd.f32 %v293, %v294
    %v296 = vadd.f32 %v287, %v295
    %297 = vst [vmem:[#allocation2] sm:$0x1] %v296
    // Predicated region
    $region34: #{tpu_custom_call.1} parent=1 // pred_check
      %p298 = pneg %p48
    $region35: #{tpu_custom_call.1} parent=1 // pred_check_branch
      %300 = sbr.rel (%p298) target = $region37
    $region36: #{tpu_custom_call.1} parent=1 // pred_region
      %v301 = vld [vmem:[#allocation2] sm:$0xff]
      %302 = vadd.xlane.f32.xlu0 %v301
      %v303 = vpop.xlane.xlu0 %302
      %v304 = vrot.slane %v303, 4
      %v305 = vadd.f32 %v303, %v304
      %v306 = vrot.slane %v305, 2
      %v307 = vadd.f32 %v305, %v306
      %v308 = vrot.slane %v307, 1
      %v309 = vadd.f32 %v307, %v308
      %s310 = vtos %v309
      %s311 = sld [smem:[#allocation4]]
      %s312 = scvt.s32.f32 %s311
      %v313 = vstv %s312
      %v314 = vrcp.pop %v313
      %s315 = vtos %v314
      %s316 = smul.f32 %s310, %s315
      %v317 = vstv %s316
      %v318 = vrsqrt.pop %v317
      %v319 = vmul.f32 %v317, %v318
      %vm320 = vcmp.eq.f32.partialorder %v317, inf
      %v321 = vsel %vm320, %v317, %v319
      %vm322 = vcmp.eq.f32.partialorder %v317, 0.0
      %v323 = vand.u32 %v317, 2147483648
      %v324 = vsel %vm322, %v323, %v321
      %s325 = vtos %v324
      %s326 = scalar_lea.smem [#allocation10], 0
      %327 = sst [smem:[%s326]] %s325
    $region37: #{tpu_custom_call.1} parent=1 // pred_fallthru
      _
    // Predicated region
    $region38: #{tpu_custom_call.1} parent=1 // pred_check
      _
    $region39: #{tpu_custom_call.1} parent=1 // pred_check_branch
      %329 = sbr.rel (0) target = $region41
    $region40: #{tpu_custom_call.1} parent=1 // pred_region
      %s331 = ssub.s32 16, 16
      %332 = vsyncadd [#allocation7], %s331
      %335 = dma.smem_to_hbm [#allocation10], 16, %s6, [#allocation7]
    $region41: #{tpu_custom_call.1} parent=1 // pred_fallthru
      _
    // Predicated region
    $region42: #{tpu_custom_call.1} parent=1 // pred_check
      _
    $region43: #{tpu_custom_call.1} parent=1 // pred_check_branch
      %337 = sbr.rel (0) target = $region45
    $region44: #{tpu_custom_call.1} parent=1 // pred_region
      %338 = dma.done [#allocation7], 16
    $region45: #{tpu_custom_call.1} parent=1 // pred_fallthru
      _
    %339 = sfence
    %340 = vsyncpa [#allocation6], 1
    %341 = vsyncpa [#allocation7], 1
    %342 = vsyncpa [#allocation8], 1

</llo_original>
